<compile_context>
chip_gen: v7x
topology: tpu7x:2x2x1
jax: 0.10.0
libtpu: 0.0.40
codegen_flags: <defaults>
</compile_context>

<pallas_src>
import functools

import jax
import jax.numpy as jnp
from jax.experimental import pallas as pl
from jax.experimental.pallas import tpu as pltpu

IN_FEATURES = 30
OUT_FEATURES = 10

# Batches below this use a fused XLA op instead of pallas_call.
_SMALL_BATCH_FAST_PATH = 2048
# Cap on the batch tile: double-buffered x + out blocks (both lane-padded to
# 128) cost ~2048 * tb bytes; tb=16384 -> ~34 MiB, safe under v7x's 64 MiB.
_MAX_TB = 16384
_VMEM_LIMIT_BYTES = 40 << 20  # > v5e/v6e scoped defaults, < v7x physical VMEM


def _round_up(x: int, m: int) -> int:
    return ((x + m - 1) // m) * m


def linear_relu_kernel(x_ref, w_ref, b_ref, o_ref):
    # x_ref: (TB, 30)  -- one batch tile (streamed, double-buffered)
    # w_ref: (10, 30)  -- PyTorch nn.Linear layout (out, in); resident in VMEM
    # b_ref: (1, 10)
    # o_ref: (TB, 10)  -- written directly in the final (B, 10) layout
    x = x_ref[...]
    w = w_ref[...]
    # x @ w.T : contract the feature dim of both operands -> (TB, 10).
    # The small weight lands on the MXU stationary side; x streams through.
    y = jax.lax.dot_general(
        x, w,
        dimension_numbers=(((1,), (1,)), ((), ())),
        preferred_element_type=jnp.float32,
    )
    y = y + b_ref[...]                       # (1, 10) broadcasts over rows
    o_ref[...] = jnp.maximum(y, 0.0).astype(o_ref.dtype)


@functools.partial(jax.jit, static_argnames=("tb", "use_pallas"))
def temp_model_forward(x, w, b, *, tb: int = 8192, use_pallas=None):
    """x: (B, 30) f32, w: (10, 30) f32 (PyTorch layout), b: (10,) f32 -> (B, 10)."""
    B = x.shape[0]

    if use_pallas is None:
        use_pallas = B >= _SMALL_BATCH_FAST_PATH
    if not use_pallas:
        # Tiny batch: a single fused XLA op beats any pallas_call fixed cost.
        return jnp.maximum(x @ w.T + b, 0.0)

    # Tile selection: multiple of 128, capped by padded batch and VMEM budget.
    tb = max(128, min(tb, _MAX_TB, _round_up(max(B, 1), 128)))
    tb = _round_up(tb, 128)
    assert tb % 128 == 0, "batch tile must be a multiple of 128"

    b_pad = _round_up(B, tb)
    if b_pad != B:
        x = jnp.pad(x, ((0, b_pad - B), (0, 0)))   # padded rows -> ReLU(b), sliced off

    b2d = b.reshape(1, OUT_FEATURES)
    grid = (b_pad // tb,)

    out = pl.pallas_call(
        linear_relu_kernel,
        out_shape=jax.ShapeDtypeStruct((b_pad, OUT_FEATURES), x.dtype),
        grid_spec=pltpu.PrefetchScalarGridSpec(
            num_scalar_prefetch=0,
            grid=grid,
            in_specs=[
                # x: tiled along batch (block index advances with the grid)
                pl.BlockSpec((tb, IN_FEATURES), lambda i: (i, 0)),
                # w, b: constant block index -> stay resident, no per-step DMA
                pl.BlockSpec((OUT_FEATURES, IN_FEATURES), lambda i: (0, 0)),
                pl.BlockSpec((1, OUT_FEATURES), lambda i: (0, 0)),
            ],
            out_specs=pl.BlockSpec((tb, OUT_FEATURES), lambda i: (i, 0)),
        ),
        compiler_params=pltpu.CompilerParams(
            # Batch tiles are independent -> shard grid steps across TCs on v7x.
            dimension_semantics=("parallel",),
            vmem_limit_bytes=_VMEM_LIMIT_BYTES,
        ),
        cost_estimate=pl.CostEstimate(
            flops=2 * b_pad * IN_FEATURES * OUT_FEATURES,
            transcendentals=0,
            bytes_accessed=(
                b_pad * (IN_FEATURES + OUT_FEATURES) * 4
                + IN_FEATURES * OUT_FEATURES * 4
                + OUT_FEATURES * 4
            ),
        ),
    )(x, w, b2d)

    # Already in (B, 10) layout; just drop padded rows.
    return out[:B]


def init_params(key):
    """Deterministic init mirroring nn.Linear(30, 10) defaults (PyTorch layout)."""
    k_w, k_b = jax.random.split(key)
    bound = 1.0 / (IN_FEATURES ** 0.5)
    w = jax.random.uniform(
        k_w, (OUT_FEATURES, IN_FEATURES), jnp.float32, minval=-bound, maxval=bound
    )
    b = jax.random.uniform(
        k_b, (OUT_FEATURES,), jnp.float32, minval=-bound, maxval=bound
    )
    return w, b


def _reference(x, w, b):
    return jnp.maximum(x @ w.T + b, 0.0)


if __name__ == "__main__":
    key = jax.random.PRNGKey(0)
    k_x1, k_x2, k_p = jax.random.split(key, 3)
    w, b = init_params(k_p)

    # Small case forced through the Pallas kernel (single grid step, tb=128).
    batch = 8
    x1 = jax.random.normal(k_x1, (batch, IN_FEATURES), jnp.float32)
    out1 = jax.block_until_ready(temp_model_forward(x1, w, b, use_pallas=True))
    assert out1.shape == (batch, OUT_FEATURES)
    assert jnp.allclose(out1, _reference(x1, w, b), atol=1e-5, rtol=1e-5)

    # Ragged batch with a small explicit tile to exercise multi-step
    # pipelining + padding (300 rows, tb=128 -> grid of 3, pad to 384).
    batch2 = 300
    x2 = jax.random.normal(k_x2, (batch2, IN_FEATURES), jnp.float32)
    out2 = jax.block_until_ready(
        temp_model_forward(x2, w, b, tb=128, use_pallas=True)
    )
    assert out2.shape == (batch2, OUT_FEATURES)
    assert jnp.allclose(out2, _reference(x2, w, b), atol=1e-5, rtol=1e-5)

    # Default auto dispatch: tiny batch takes the fused-XLA fast path.
    out3 = jax.block_until_ready(temp_model_forward(x1, w, b))
    assert out3.shape == (batch, OUT_FEATURES)
    assert jnp.allclose(out3, _reference(x1, w, b), atol=1e-5, rtol=1e-5)

    print("KERNEL_OK")
</pallas_src>

<mosaic_0001>
module attributes {stable_mosaic.version = 11 : i64} {
  func.func @linear_relu_kernel(%arg0: i32, %arg1: memref<128x30xf32, #tpu.memory_space<vmem>>, %arg2: memref<10x30xf32, #tpu.memory_space<vmem>>, %arg3: memref<1x10xf32, #tpu.memory_space<vmem>>, %arg4: memref<128x10xf32, #tpu.memory_space<vmem>>) attributes {dimension_semantics = [#tpu.dimension_semantics<parallel>], iteration_bounds = array<i64: 1>, scalar_prefetch = 0 : i64, scratch_operands = 0 : i64, tpu.core_type = #tpu.core_type<tc>, window_params = [{transform_indices = @transform_0, window_bounds = array<i64: 128, 30>}, {pipeline_mode = #tpu.pipeline_mode<synchronous>, transform_indices = @transform_1, window_bounds = array<i64: 10, 30>}, {pipeline_mode = #tpu.pipeline_mode<synchronous>, transform_indices = @transform_2, window_bounds = array<i64: 1, 10>}, {transform_indices = @transform_3, window_bounds = array<i64: 128, 10>}]} {
    %c0 = arith.constant 0 : index
    %c0_0 = arith.constant 0 : index
    %0 = vector.load %arg1[%c0, %c0_0] : memref<128x30xf32, #tpu.memory_space<vmem>>, vector<128x30xf32>
    %c0_1 = arith.constant 0 : index
    %c0_2 = arith.constant 0 : index
    %1 = vector.load %arg2[%c0_1, %c0_2] : memref<10x30xf32, #tpu.memory_space<vmem>>, vector<10x30xf32>
    %cst = arith.constant dense<0.000000e+00> : vector<128x10xf32>
    %2 = tpu.matmul %0, %1, %cst {dimension_numbers = #tpu.dot_dimension_numbers<[1], [1], [0], [0], [0, 0, 1, 0], [], []>} : vector<128x30xf32>, vector<10x30xf32>, vector<128x10xf32> -> vector<128x10xf32>
    %c0_3 = arith.constant 0 : index
    %c0_4 = arith.constant 0 : index
    %3 = vector.load %arg3[%c0_3, %c0_4] : memref<1x10xf32, #tpu.memory_space<vmem>>, vector<1x10xf32>
    %4 = vector.broadcast %3 : vector<1x10xf32> to vector<128x10xf32>
    %5 = arith.addf %2, %4 : vector<128x10xf32>
    %cst_5 = arith.constant 0.000000e+00 : f32
    %6 = vector.broadcast %cst_5 : f32 to vector<128x10xf32>
    %7 = arith.maximumf %5, %6 : vector<128x10xf32>
    %c0_6 = arith.constant 0 : index
    %c0_7 = arith.constant 0 : index
    %8 = vector.load %arg4[%c0_6, %c0_7] : memref<128x10xf32, #tpu.memory_space<vmem>>, vector<128x10xf32>
    tpu.vector_store %arg4[%c0_6, %c0_7], %7 {strides = array<i32>} : memref<128x10xf32, #tpu.memory_space<vmem>>, vector<128x10xf32>,
    return
  }
  func.func @transform_0(%arg0: i32) -> (i32, i32) {
    %c0_i32 = arith.constant 0 : i32
    %c0_i32_0 = arith.constant 0 : i32
    return %arg0, %c0_i32 : i32, i32
  }
  func.func @transform_1(%arg0: i32) -> (i32, i32) {
    %c0_i32 = arith.constant 0 : i32
    %c0_i32_0 = arith.constant 0 : i32
    %c0_i32_1 = arith.constant 0 : i32
    return %c0_i32, %c0_i32_0 : i32, i32
  }
  func.func @transform_2(%arg0: i32) -> (i32, i32) {
    %c0_i32 = arith.constant 0 : i32
    %c0_i32_0 = arith.constant 0 : i32
    %c0_i32_1 = arith.constant 0 : i32
    return %c0_i32, %c0_i32_0 : i32, i32
  }
  func.func @transform_3(%arg0: i32) -> (i32, i32) {
    %c0_i32 = arith.constant 0 : i32
    %c0_i32_0 = arith.constant 0 : i32
    return %arg0, %c0_i32 : i32, i32
  }
}

</mosaic_0001>

<llo_original>
// kernel: temp_model_forward.1
$region0: #{temp_model_forward.1}
  #allocation0 [shape = 'u32[]', space=smem, size = 0x4, offset = 0x4, fixed_abs, tag = 'smem constant byte address 0x4 - core index']
  #allocation1 [shape = 'u32[144,128]{1,0:T(1,128)}', space=vmem, size = 0x12000, scoped, tag = 'internal scratch']
  %s0 = inlined_call_operand.vmem [shape: f32[128,30], index: 0, kind: input, shape index: {}]
  %s1 = inlined_call_operand.vmem [shape: f32[10,30], index: 1, kind: input, shape index: {}]
  %s2 = inlined_call_operand.vmem [shape: f32[1,10], index: 2, kind: input, shape index: {}]
  %s3 = inlined_call_operand.vmem [shape: f32[128,10], index: 3, kind: output, shape index: {}]
  %s4 = sld [smem:[#allocation0]]
  $region22: #{temp_model_forward.1} parent=0
    _
  %s6 = ssub.s32 1, %s4
  %s7 = scalar_select 0, %s6, %s4
  // Predicated region
  $region2: #{temp_model_forward.1} parent=0 // pred_check
    _
  $region3: #{temp_model_forward.1} parent=0 // pred_check_branch
    %9 = sbr.rel (0) target = $region5
  $region4: #{temp_model_forward.1} parent=0 // pred_region
    _
  $region5: #{temp_model_forward.1} parent=0 // pred_fallthru
    _
  // Predicated region
  $region6: #{temp_model_forward.1} parent=0 // pred_check
    _
  $region7: #{temp_model_forward.1} parent=0 // pred_check_branch
    %11 = sbr.rel (0) target = $region9
  $region8: #{temp_model_forward.1} parent=0 // pred_region
    _
  $region9: #{temp_model_forward.1} parent=0 // pred_fallthru
    _
  // Predicated region
  $region10: #{temp_model_forward.1} parent=0 // pred_check
    _
  $region11: #{temp_model_forward.1} parent=0 // pred_check_branch
    %13 = sbr.rel (0) target = $region13
  $region12: #{temp_model_forward.1} parent=0 // pred_region
    _
  $region13: #{temp_model_forward.1} parent=0 // pred_fallthru
    _
  %v14 = vld [vmem:[%s0] sm:$0xff]
  %v15 = vld [vmem:[%s0 + $0x8] sm:$0xff]
  %v16 = vld [vmem:[%s0 + $0x10] sm:$0xff]
  %v17 = vld [vmem:[%s0 + $0x18] sm:$0xff]
  %v18 = vld [vmem:[%s0 + $0x20] sm:$0xff]
  %v19 = vld [vmem:[%s0 + $0x28] sm:$0xff]
  %v20 = vld [vmem:[%s0 + $0x30] sm:$0xff]
  %v21 = vld [vmem:[%s0 + $0x38] sm:$0xff]
  %v22 = vld [vmem:[%s0 + $0x40] sm:$0xff]
  %v23 = vld [vmem:[%s0 + $0x48] sm:$0xff]
  %v24 = vld [vmem:[%s0 + $0x50] sm:$0xff]
  %v25 = vld [vmem:[%s0 + $0x58] sm:$0xff]
  %v26 = vld [vmem:[%s0 + $0x60] sm:$0xff]
  %v27 = vld [vmem:[%s0 + $0x68] sm:$0xff]
  %v28 = vld [vmem:[%s0 + $0x70] sm:$0xff]
  %v29 = vld [vmem:[%s0 + $0x78] sm:$0xff]
  %v30 = vld [vmem:[%s1] sm:$0xff]
  %v31 = vld [vmem:[%s1 + $0x8] sm:$0x3]
  %v32 = vld [vmem:[%s2] sm:$0x1]
  %v34 = vlaneseq
  %v35 = vshrl.u32 %v34, 7
  %v36 = vsub.s32 0, %v35
  %v37 = vrot.slane %v32, %v36
  %vm39 = vcmask 244736
  %v41 = vsel %vm39, %v14, 0
  %v44 = vsel %vm39, %v15, 0
  %v47 = vsel %vm39, %v16, 0
  %v50 = vsel %vm39, %v17, 0
  %v53 = vsel %vm39, %v18, 0
  %v56 = vsel %vm39, %v19, 0
  %v59 = vsel %vm39, %v20, 0
  %v62 = vsel %vm39, %v21, 0
  %v65 = vsel %vm39, %v22, 0
  %v68 = vsel %vm39, %v23, 0
  %v71 = vsel %vm39, %v24, 0
  %v74 = vsel %vm39, %v25, 0
  %v77 = vsel %vm39, %v26, 0
  %v80 = vsel %vm39, %v27, 0
  %v83 = vsel %vm39, %v28, 0
  %v86 = vsel %vm39, %v29, 0
  %v89 = vsel %vm39, %v30, 0
  %v92 = vsel %vm39, %v31, 0
  %94 = vmatprep.subr.mxu0 0.0
  %95 = vmatpush1.xpose.msra.mxu0 %v89
  %96 = vmatprep.subr.mxu0 0.0
  %97 = vmatpush1.xpose.msra.mxu0 %v92
  %98 = vmatprep.subr.mxu0 0.0
  %99 = vmatpush1.xpose.msra.mxu0 0.0
  %100 = vmatprep.subr.mxu0 0.0
  %101 = vmatpush1.xpose.msra.mxu0 0.0
  %102 = vmatprep.subr.mxu0 0.0
  %103 = vmatpush1.xpose.msra.mxu0 0.0
  %104 = vmatprep.subr.mxu0 0.0
  %105 = vmatpush1.xpose.msra.mxu0 0.0
  %106 = vmatprep.subr.mxu0 0.0
  %107 = vmatpush1.xpose.msra.mxu0 0.0
  %108 = vmatprep.subr.mxu0 0.0
  %109 = vmatpush1.xpose.msra.mxu0 0.0
  %110 = vmatprep.subr.mxu0 0.0
  %111 = vmatpush1.xpose.msra.mxu0 0.0
  %112 = vmatprep.subr.mxu0 0.0
  %113 = vmatpush1.xpose.msra.mxu0 0.0
  %114 = vmatprep.subr.mxu0 0.0
  %115 = vmatpush1.xpose.msra.mxu0 0.0
  %116 = vmatprep.subr.mxu0 0.0
  %117 = vmatpush1.xpose.msra.mxu0 0.0
  %118 = vmatprep.subr.mxu0 0.0
  %119 = vmatpush1.xpose.msra.mxu0 0.0
  %120 = vmatprep.subr.mxu0 0.0
  %121 = vmatpush1.xpose.msra.mxu0 0.0
  %122 = vmatprep.subr.mxu0 0.0
  %123 = vmatpush1.xpose.msra.mxu0 0.0
  %124 = vmatprep.subr.mxu0 0.0
  %125 = vmatpush1.xpose.msra.mxu0 0.0
  %126 = vmatprep.subr.mxu0 0.0
  %127 = vmatpush1.xpose.msra.mxu0 0.0
  %128 = vmatprep.subr.mxu0 0.0
  %129 = vmatpush1.xpose.msra.mxu0 0.0
  %130 = vmatprep.subr.mxu0 0.0
  %131 = vmatpush1.xpose.msra.mxu0 0.0
  %132 = vmatprep.subr.mxu0 0.0
  %133 = vmatpush1.xpose.msra.mxu0 0.0
  %134 = vmatprep.subr.mxu0 0.0
  %135 = vmatpush1.xpose.msra.mxu0 0.0
  %136 = vmatprep.subr.mxu0 0.0
  %137 = vmatpush1.xpose.msra.mxu0 0.0
  %138 = vmatprep.subr.mxu0 0.0
  %139 = vmatpush1.xpose.msra.mxu0 0.0
  %140 = vmatprep.subr.mxu0 0.0
  %141 = vmatpush1.xpose.msra.mxu0 0.0
  %142 = vmatprep.subr.mxu0 0.0
  %143 = vmatpush1.xpose.msra.mxu0 0.0
  %144 = vmatprep.subr.mxu0 0.0
  %145 = vmatpush1.xpose.msra.mxu0 0.0
  %146 = vmatprep.subr.mxu0 0.0
  %147 = vmatpush1.xpose.msra.mxu0 0.0
  %148 = vmatprep.subr.mxu0 0.0
  %149 = vmatpush1.xpose.msra.mxu0 0.0
  %150 = vmatprep.subr.mxu0 0.0
  %151 = vmatpush1.xpose.msra.mxu0 0.0
  %152 = vmatprep.subr.mxu0 0.0
  %153 = vmatpush1.xpose.msra.mxu0 0.0
  %154 = vmatprep.subr.mxu0 0.0
  %155 = vmatpush1.xpose.msra.mxu0 0.0
  %156 = vmatprep.subr.mxu0 0.0
  %157 = vmatpush1.xpose.msra.mxu0 0.0
  %158 = vmatprep.mubr.f32.mxu0 0.0
  %159 = vmatmul.mubr.f32.gmra.mrb[0].mxu0 %v41
  %v160 = vpop.f32.mrb[0].mxu0
  %v161 = vadd.f32 %v37, %v160
  %v162 = vpop.f32.mrb[0].mxu0
  %163 = vmatprep.mubr.f32.mxu0 0.0
  %164 = vmatmul.mubr.f32.gmra.mrb[0].mxu0 %v44
  %v165 = vpop.f32.mrb[0].mxu0
  %v166 = vadd.f32 %v37, %v165
  %v167 = vpop.f32.mrb[0].mxu0
  %168 = vmatprep.mubr.f32.mxu0 0.0
  %169 = vmatmul.mubr.f32.gmra.mrb[0].mxu0 %v47
  %v170 = vpop.f32.mrb[0].mxu0
  %v171 = vadd.f32 %v37, %v170
  %v172 = vpop.f32.mrb[0].mxu0
  %173 = vmatprep.mubr.f32.mxu0 0.0
  %174 = vmatmul.mubr.f32.gmra.mrb[0].mxu0 %v50
  %v175 = vpop.f32.mrb[0].mxu0
  %v176 = vadd.f32 %v37, %v175
  %v177 = vpop.f32.mrb[0].mxu0
  %178 = vmatprep.mubr.f32.mxu0 0.0
  %179 = vmatmul.mubr.f32.gmra.mrb[0].mxu0 %v53
  %v180 = vpop.f32.mrb[0].mxu0
  %v181 = vadd.f32 %v37, %v180
  %v182 = vpop.f32.mrb[0].mxu0
  %183 = vmatprep.mubr.f32.mxu0 0.0
  %184 = vmatmul.mubr.f32.gmra.mrb[0].mxu0 %v56
  %v185 = vpop.f32.mrb[0].mxu0
  %v186 = vadd.f32 %v37, %v185
  %v187 = vpop.f32.mrb[0].mxu0
  %188 = vmatprep.mubr.f32.mxu0 0.0
  %189 = vmatmul.mubr.f32.gmra.mrb[0].mxu0 %v59
  %v190 = vpop.f32.mrb[0].mxu0
  %v191 = vadd.f32 %v37, %v190
  %v192 = vpop.f32.mrb[0].mxu0
  %193 = vmatprep.mubr.f32.mxu0 0.0
  %194 = vmatmul.mubr.f32.gmra.mrb[0].mxu0 %v62
  %v195 = vpop.f32.mrb[0].mxu0
  %v196 = vadd.f32 %v37, %v195
  %v197 = vpop.f32.mrb[0].mxu0
  %198 = vmatprep.mubr.f32.mxu0 0.0
  %199 = vmatmul.mubr.f32.gmra.mrb[0].mxu0 %v65
  %v200 = vpop.f32.mrb[0].mxu0
  %v201 = vadd.f32 %v37, %v200
  %v202 = vpop.f32.mrb[0].mxu0
  %203 = vmatprep.mubr.f32.mxu0 0.0
  %204 = vmatmul.mubr.f32.gmra.mrb[0].mxu0 %v68
  %v205 = vpop.f32.mrb[0].mxu0
  %v206 = vadd.f32 %v37, %v205
  %v207 = vpop.f32.mrb[0].mxu0
  %208 = vmatprep.mubr.f32.mxu0 0.0
  %209 = vmatmul.mubr.f32.gmra.mrb[0].mxu0 %v71
  %v210 = vpop.f32.mrb[0].mxu0
  %v211 = vadd.f32 %v37, %v210
  %v212 = vpop.f32.mrb[0].mxu0
  %213 = vmatprep.mubr.f32.mxu0 0.0
  %214 = vmatmul.mubr.f32.gmra.mrb[0].mxu0 %v74
  %v215 = vpop.f32.mrb[0].mxu0
  %v216 = vadd.f32 %v37, %v215
  %v217 = vpop.f32.mrb[0].mxu0
  %218 = vmatprep.mubr.f32.mxu0 0.0
  %219 = vmatmul.mubr.f32.gmra.mrb[0].mxu0 %v77
  %v220 = vpop.f32.mrb[0].mxu0
  %v221 = vadd.f32 %v37, %v220
  %v222 = vpop.f32.mrb[0].mxu0
  %223 = vmatprep.mubr.f32.mxu0 0.0
  %224 = vmatmul.mubr.f32.gmra.mrb[0].mxu0 %v80
  %v225 = vpop.f32.mrb[0].mxu0
  %v226 = vadd.f32 %v37, %v225
  %v227 = vpop.f32.mrb[0].mxu0
  %228 = vmatprep.mubr.f32.mxu0 0.0
  %229 = vmatmul.mubr.f32.gmra.mrb[0].mxu0 %v83
  %v230 = vpop.f32.mrb[0].mxu0
  %v231 = vadd.f32 %v37, %v230
  %v232 = vpop.f32.mrb[0].mxu0
  %233 = vmatprep.mubr.f32.mxu0 0.0
  %234 = vmatmul.mubr.f32.gmra.mrb[0].mxu0 %v86
  %v235 = vpop.f32.mrb[0].mxu0
  %v236 = vadd.f32 %v37, %v235
  %v237 = vpop.f32.mrb[0].mxu0
  %238 = vdwg.mxu0
  %v239 = vmax.f32 %v161, 0.0
  %v240 = vmax.f32 %v166, 0.0
  %v241 = vmax.f32 %v171, 0.0
  %v242 = vmax.f32 %v176, 0.0
  %v243 = vmax.f32 %v181, 0.0
  %v244 = vmax.f32 %v186, 0.0
  %v245 = vmax.f32 %v191, 0.0
  %v246 = vmax.f32 %v196, 0.0
  %v247 = vmax.f32 %v201, 0.0
  %v248 = vmax.f32 %v206, 0.0
  %v249 = vmax.f32 %v211, 0.0
  %v250 = vmax.f32 %v216, 0.0
  %v251 = vmax.f32 %v221, 0.0
  %v252 = vmax.f32 %v226, 0.0
  %v253 = vmax.f32 %v231, 0.0
  %v254 = vmax.f32 %v236, 0.0
  %vm255 = vcmask 80896
  %256 = vst.msk [vmem:[%s3] sm:$0xff] %vm255, %v239
  %257 = vst.msk [vmem:[%s3 + $0x8] sm:$0xff] %vm255, %v240
  %258 = vst.msk [vmem:[%s3 + $0x10] sm:$0xff] %vm255, %v241
  %259 = vst.msk [vmem:[%s3 + $0x18] sm:$0xff] %vm255, %v242
  %260 = vst.msk [vmem:[%s3 + $0x20] sm:$0xff] %vm255, %v243
  %261 = vst.msk [vmem:[%s3 + $0x28] sm:$0xff] %vm255, %v244
  %262 = vst.msk [vmem:[%s3 + $0x30] sm:$0xff] %vm255, %v245
  %263 = vst.msk [vmem:[%s3 + $0x38] sm:$0xff] %vm255, %v246
  %264 = vst.msk [vmem:[%s3 + $0x40] sm:$0xff] %vm255, %v247
  %265 = vst.msk [vmem:[%s3 + $0x48] sm:$0xff] %vm255, %v248
  %266 = vst.msk [vmem:[%s3 + $0x50] sm:$0xff] %vm255, %v249
  %267 = vst.msk [vmem:[%s3 + $0x58] sm:$0xff] %vm255, %v250
  %268 = vst.msk [vmem:[%s3 + $0x60] sm:$0xff] %vm255, %v251
  %269 = vst.msk [vmem:[%s3 + $0x68] sm:$0xff] %vm255, %v252
  %270 = vst.msk [vmem:[%s3 + $0x70] sm:$0xff] %vm255, %v253
  %271 = vst.msk [vmem:[%s3 + $0x78] sm:$0xff] %vm255, %v254
  // Predicated region
  $region14: #{temp_model_forward.1} parent=0 // pred_check
    _
  $region15: #{temp_model_forward.1} parent=0 // pred_check_branch
    %273 = sbr.rel (0) target = $region17
  $region16: #{temp_model_forward.1} parent=0 // pred_region
    _
  $region17: #{temp_model_forward.1} parent=0 // pred_fallthru
    _
  // Predicated region
  $region18: #{temp_model_forward.1} parent=0 // pred_check
    _
  $region19: #{temp_model_forward.1} parent=0 // pred_check_branch
    %275 = sbr.rel (0) target = $region21
  $region20: #{temp_model_forward.1} parent=0 // pred_region
    _
  $region21: #{temp_model_forward.1} parent=0 // pred_fallthru
    _

</llo_original>
